<compile_context>
chip_gen: v5e
topology: v5e:2x2
jax: 0.10.0
libtpu: 0.0.40
codegen_flags: <defaults>
</compile_context>

<pallas_src>
import functools

import jax
import jax.numpy as jnp
from jax.experimental import pallas as pl
from jax.experimental.pallas import tpu as pltpu


def _tv_kernel(x_ref, csh_ref, csw_ref, *, w, nc, tb, npc, ragged):
    """Accumulates per-lane-column sums of squared H / W differences."""
    hw = x_ref.shape[-1]
    i = pl.program_id(1)

    @pl.when(i == 0)
    def _init():
        csh_ref[...] = jnp.zeros_like(csh_ref)
        csw_ref[...] = jnp.zeros_like(csw_ref)

    # Compute in f32 regardless of input dtype (accumulation must be f32 and
    # v5e has no bf16 VPU path anyway).
    x = x_ref[...].astype(jnp.float32)                      # (tb, hw)

    if ragged:
        # Zero rows past the end of the real (nc, hw) array so partial last
        # blocks and (clamped) phantom blocks contribute exactly zero.
        step = pl.program_id(0) * npc + i
        rows_left = nc - step * tb
        row_id = jax.lax.broadcasted_iota(jnp.int32, x.shape, 0)
        x = jnp.where(row_id < rows_left, x, 0.0)

    # Neighbour along H is +w in the flattened plane, along W is +1.  Positive
    # shifts (hw - w) / (hw - 1) are the mod-hw equivalents of -w / -1, i.e.
    # rolled[j] = x[(j + w) % hw] / x[(j + 1) % hw].  The wrap-around columns
    # are lane-static and are dropped once in the wrapper reduction.
    dh = pltpu.roll(x, hw - w, 1) - x
    dw = pltpu.roll(x, hw - 1, 1) - x

    # Sublane reduction happens in-register; only a (1, hw) column sum touches
    # VMEM per step (the output block stays resident across the inner axis).
    csh_ref[...] += jnp.sum(dh * dh, axis=0, keepdims=True)
    csw_ref[...] += jnp.sum(dw * dw, axis=0, keepdims=True)


def tv_loss(x, tvloss_weight=1.0, block_rows=None):
    """Pallas implementation of TVLoss.forward for NCHW input x."""
    n, c, h, w = x.shape
    nc, hw = n * c, h * w
    x2 = x.reshape(nc, hw)
    dsize = x2.dtype.itemsize
    sub_mult = {4: 8, 2: 16, 1: 32}.get(dsize, 8)   # dtype-correct sublane tile

    # Generation-aware VMEM budget for the double-buffered input blocks.
    try:
        vmem_cap = int(pltpu.get_tpu_info().vmem_capacity_bytes)
    except Exception:
        vmem_cap = 64 * 1024 * 1024                 # most conservative (v7x)
    in_budget = min(32 * 1024 * 1024, vmem_cap // 4)

    # Planes (rows) per grid step.
    # TODO(synk): for very large H*W (single plane >> a few MiB) add a second
    # lane-axis grid dim with a +w halo instead of shrinking block_rows.
    row_bytes = hw * dsize
    if block_rows is not None:
        tb = int(block_rows)
    elif nc <= sub_mult or 2 * nc * row_bytes <= in_budget:
        tb = nc
    else:
        tb = max(sub_mult, (in_budget // (2 * row_bytes)) // sub_mult * sub_mult)
        tb = min(tb, (nc // sub_mult) * sub_mult)
    tb = max(1, min(tb, nc))

    nblocks = -(-nc // tb)
    # Leading "parallel" axis: used by v7x megacore to split across both TCs.
    nsplit = 2 if nblocks >= 2 else 1
    npc = -(-nblocks // nsplit)
    ragged = (nsplit * npc * tb != nc)

    if nsplit * npc > nblocks:
        # Phantom trailing blocks: clamp to the last real block (its rows are
        # then fully masked out in-kernel).
        in_index = lambda p, i: (jnp.minimum(p * npc + i, nblocks - 1), 0)
    else:
        in_index = lambda p, i: (p * npc + i, 0)

    needed = 2 * tb * row_bytes + 4 * nsplit * hw * 4
    vmem_limit = int(min(vmem_cap, max(2 * needed, 32 * 1024 * 1024)))

    kernel = functools.partial(_tv_kernel, w=w, nc=nc, tb=tb, npc=npc,
                               ragged=ragged)
    csh, csw = pl.pallas_call(
        kernel,
        out_shape=(
            jax.ShapeDtypeStruct((nsplit, 1, hw), jnp.float32),
            jax.ShapeDtypeStruct((nsplit, 1, hw), jnp.float32),
        ),
        grid_spec=pltpu.PrefetchScalarGridSpec(
            num_scalar_prefetch=0,
            grid=(nsplit, npc),
            in_specs=[pl.BlockSpec((tb, hw), in_index)],
            out_specs=(
                pl.BlockSpec((None, 1, hw), lambda p, i: (p, 0, 0)),
                pl.BlockSpec((None, 1, hw), lambda p, i: (p, 0, 0)),
            ),
        ),
        compiler_params=pltpu.CompilerParams(
            dimension_semantics=("parallel", "arbitrary"),
            vmem_limit_bytes=vmem_limit,
        ),
        cost_estimate=pl.CostEstimate(
            flops=6 * nc * hw,
            transcendentals=0,
            bytes_accessed=nc * hw * dsize + 2 * nsplit * hw * 4,
        ),
    )(x2)

    # Tiny wrapper-side epilogue: combine per-split column sums, drop the
    # lane-static wrap-around columns, and apply the TV normalisation.
    # TODO(synk): for bf16 inputs on v7x, fold this mask+reduce into the kernel
    # as a jnp.dot against 0/1 mask columns to keep the VPU off the hot path.
    col = jnp.arange(hw)
    valid_h = col < (h - 1) * w             # drop last image row
    valid_w = (col % w) != (w - 1)          # drop last image column
    colsum_h = jnp.sum(csh[:, 0, :], axis=0)
    colsum_w = jnp.sum(csw[:, 0, :], axis=0)
    h_tv = jnp.sum(jnp.where(valid_h, colsum_h, 0.0))
    w_tv = jnp.sum(jnp.where(valid_w, colsum_w, 0.0))

    # Same (div-by-zero when h==1 or w==1) semantics as the PyTorch module.
    count_h = c * (h - 1) * w
    count_w = c * h * (w - 1)
    return tvloss_weight * 2.0 * (h_tv / count_h + w_tv / count_w) / n


def _tv_ref(x):
    n, c, h, w = x.shape
    h_tv = jnp.sum((x[:, :, 1:, :] - x[:, :, : h - 1, :]) ** 2)
    w_tv = jnp.sum((x[:, :, :, 1:] - x[:, :, :, : w - 1]) ** 2)
    return 2.0 * (h_tv / (c * (h - 1) * w) + w_tv / (c * h * (w - 1))) / n


if __name__ == "__main__":
    # Primary shape implied by the module spec.
    x = jax.random.normal(jax.random.PRNGKey(0), (2, 4, 16, 16),
                          dtype=jnp.float32)
    out = jax.block_until_ready(tv_loss(x, tvloss_weight=1.0))
    ref = _tv_ref(x)
    assert jnp.allclose(out, ref, rtol=1e-5, atol=1e-5), (out, ref)

    # Multi-block + parallel split (accumulation across inner grid steps).
    x2 = jax.random.normal(jax.random.PRNGKey(1), (2, 16, 16, 16),
                           dtype=jnp.float32)
    out2 = jax.block_until_ready(tv_loss(x2, block_rows=8))
    ref2 = _tv_ref(x2)
    assert jnp.allclose(out2, ref2, rtol=1e-5, atol=1e-5), (out2, ref2)

    # Ragged plane count: partial last block + phantom (clamped) block.
    x3 = jax.random.normal(jax.random.PRNGKey(2), (3, 7, 16, 16),
                           dtype=jnp.float32)
    out3 = jax.block_until_ready(tv_loss(x3, block_rows=8))
    ref3 = _tv_ref(x3)
    assert jnp.allclose(out3, ref3, rtol=1e-5, atol=1e-5), (out3, ref3)

    print("KERNEL_OK")
</pallas_src>

<mosaic_0001>
module attributes {stable_mosaic.version = 11 : i64} {
  func.func @_tv_kernel(%arg0: i32, %arg1: i32, %arg2: memref<8x256xf32, #tpu.memory_space<vmem>>, %arg3: memref<1x1x256xf32, #tpu.memory_space<vmem>>, %arg4: memref<1x1x256xf32, #tpu.memory_space<vmem>>) attributes {dimension_semantics = [#tpu.dimension_semantics<parallel>, #tpu.dimension_semantics<arbitrary>], iteration_bounds = array<i64: 1, 1>, scalar_prefetch = 0 : i64, scratch_operands = 0 : i64, tpu.core_type = #tpu.core_type<tc>, window_params = [{transform_indices = @transform_0, window_bounds = array<i64: 8, 256>}, {transform_indices = @transform_1, window_bounds = array<i64: 1, 1, 256>}, {transform_indices = @transform_2, window_bounds = array<i64: 1, 1, 256>}]} {
    %c0_i32 = arith.constant 0 : i32
    %0 = arith.cmpi eq, %arg1, %c0_i32 : i32
    %1 = arith.extui %0 : i1 to i32
    %c0_i32_0 = arith.constant 0 : i32
    %2 = arith.cmpi ne, %1, %c0_i32_0 : i32
    scf.if %2 {
      %cst_15 = arith.constant 0.000000e+00 : f32
      %26 = vector.broadcast %cst_15 : f32 to vector<1x256xf32>
      %c0_16 = arith.constant 0 : index
      %c0_17 = arith.constant 0 : index
      %c0_18 = arith.constant 0 : index
      %27 = vector.load %arg3[%c0_16, %c0_17, %c0_18] : memref<1x1x256xf32, #tpu.memory_space<vmem>>, vector<1x1x256xf32>
      %28 = vector.shape_cast %27 : vector<1x1x256xf32> to vector<1x256xf32>
      %29 = vector.shape_cast %26 : vector<1x256xf32> to vector<1x1x256xf32>
      tpu.vector_store %arg3[%c0_16, %c0_17, %c0_18], %29 {strides = array<i32>} : memref<1x1x256xf32, #tpu.memory_space<vmem>>, vector<1x1x256xf32>,
      %cst_19 = arith.constant 0.000000e+00 : f32
      %30 = vector.broadcast %cst_19 : f32 to vector<1x256xf32>
      %c0_20 = arith.constant 0 : index
      %c0_21 = arith.constant 0 : index
      %c0_22 = arith.constant 0 : index
      %31 = vector.load %arg4[%c0_20, %c0_21, %c0_22] : memref<1x1x256xf32, #tpu.memory_space<vmem>>, vector<1x1x256xf32>
      %32 = vector.shape_cast %31 : vector<1x1x256xf32> to vector<1x256xf32>
      %33 = vector.shape_cast %30 : vector<1x256xf32> to vector<1x1x256xf32>
      tpu.vector_store %arg4[%c0_20, %c0_21, %c0_22], %33 {strides = array<i32>} : memref<1x1x256xf32, #tpu.memory_space<vmem>>, vector<1x1x256xf32>,
    } else {
    }
    %c0 = arith.constant 0 : index
    %c0_1 = arith.constant 0 : index
    %3 = vector.load %arg2[%c0, %c0_1] : memref<8x256xf32, #tpu.memory_space<vmem>>, vector<8x256xf32>
    %c240_i32 = arith.constant 240 : i32
    %4 = tpu.dynamic_rotate %3 by %c240_i32 dim 1 : vector<8x256xf32>, i32 -> vector<8x256xf32>
    %5 = arith.subf %4, %3 : vector<8x256xf32>
    %c255_i32 = arith.constant 255 : i32
    %6 = tpu.dynamic_rotate %3 by %c255_i32 dim 1 : vector<8x256xf32>, i32 -> vector<8x256xf32>
    %7 = arith.subf %6, %3 : vector<8x256xf32>
    %c0_2 = arith.constant 0 : index
    %c0_3 = arith.constant 0 : index
    %c0_4 = arith.constant 0 : index
    %8 = vector.load %arg3[%c0_2, %c0_3, %c0_4] : memref<1x1x256xf32, #tpu.memory_space<vmem>>, vector<1x1x256xf32>
    %9 = vector.shape_cast %8 : vector<1x1x256xf32> to vector<1x256xf32>
    %10 = arith.mulf %5, %5 : vector<8x256xf32>
    %cst = arith.constant dense<0.000000e+00> : vector<256xf32>
    %11 = vector.multi_reduction <add>, %10, %cst [0] : vector<8x256xf32> to vector<256xf32>
    %12 = vector.shape_cast %11 : vector<256xf32> to vector<1x256xf32>
    %13 = arith.addf %9, %12 : vector<1x256xf32>
    %c0_5 = arith.constant 0 : index
    %c0_6 = arith.constant 0 : index
    %c0_7 = arith.constant 0 : index
    %14 = vector.load %arg3[%c0_5, %c0_6, %c0_7] : memref<1x1x256xf32, #tpu.memory_space<vmem>>, vector<1x1x256xf32>
    %15 = vector.shape_cast %14 : vector<1x1x256xf32> to vector<1x256xf32>
    %16 = vector.shape_cast %13 : vector<1x256xf32> to vector<1x1x256xf32>
    tpu.vector_store %arg3[%c0_5, %c0_6, %c0_7], %16 {strides = array<i32>} : memref<1x1x256xf32, #tpu.memory_space<vmem>>, vector<1x1x256xf32>,
    %c0_8 = arith.constant 0 : index
    %c0_9 = arith.constant 0 : index
    %c0_10 = arith.constant 0 : index
    %17 = vector.load %arg4[%c0_8, %c0_9, %c0_10] : memref<1x1x256xf32, #tpu.memory_space<vmem>>, vector<1x1x256xf32>
    %18 = vector.shape_cast %17 : vector<1x1x256xf32> to vector<1x256xf32>
    %19 = arith.mulf %7, %7 : vector<8x256xf32>
    %cst_11 = arith.constant dense<0.000000e+00> : vector<256xf32>
    %20 = vector.multi_reduction <add>, %19, %cst_11 [0] : vector<8x256xf32> to vector<256xf32>
    %21 = vector.shape_cast %20 : vector<256xf32> to vector<1x256xf32>
    %22 = arith.addf %18, %21 : vector<1x256xf32>
    %c0_12 = arith.constant 0 : index
    %c0_13 = arith.constant 0 : index
    %c0_14 = arith.constant 0 : index
    %23 = vector.load %arg4[%c0_12, %c0_13, %c0_14] : memref<1x1x256xf32, #tpu.memory_space<vmem>>, vector<1x1x256xf32>
    %24 = vector.shape_cast %23 : vector<1x1x256xf32> to vector<1x256xf32>
    %25 = vector.shape_cast %22 : vector<1x256xf32> to vector<1x1x256xf32>
    tpu.vector_store %arg4[%c0_12, %c0_13, %c0_14], %25 {strides = array<i32>} : memref<1x1x256xf32, #tpu.memory_space<vmem>>, vector<1x1x256xf32>,
    return
  }
  func.func @transform_0(%arg0: i32, %arg1: i32) -> (i32, i32) {
    %c1_i32 = arith.constant 1 : i32
    %0 = arith.muli %arg0, %c1_i32 : i32
    %1 = arith.addi %0, %arg1 : i32
    %c0_i32 = arith.constant 0 : i32
    %c0_i32_0 = arith.constant 0 : i32
    return %1, %c0_i32 : i32, i32
  }
  func.func @transform_1(%arg0: i32, %arg1: i32) -> (i32, i32, i32) {
    %c0_i32 = arith.constant 0 : i32
    %c0_i32_0 = arith.constant 0 : i32
    %c0_i32_1 = arith.constant 0 : i32
    return %arg0, %c0_i32, %c0_i32_0 : i32, i32, i32
  }
  func.func @transform_2(%arg0: i32, %arg1: i32) -> (i32, i32, i32) {
    %c0_i32 = arith.constant 0 : i32
    %c0_i32_0 = arith.constant 0 : i32
    %c0_i32_1 = arith.constant 0 : i32
    return %arg0, %c0_i32, %c0_i32_0 : i32, i32, i32
  }
}

</mosaic_0001>

<llo_original>
// kernel: tpu_custom_call.1
$region0: #{tpu_custom_call.1}
  #allocation0 [shape = 'u32[]', space=smem, size = 0x4, offset = 0x4, fixed_abs, tag = 'smem constant byte address 0x4 - core index']
  #allocation1 [shape = 'u32[72,128]{1,0:T(1,128)}', space=vmem, size = 0x9000, scoped, tag = 'internal scratch']
  %s0 = inlined_call_operand.hbm [shape: f32[8,256], index: 0, kind: input, shape index: {}]
  %s1 = inlined_call_operand.hbm [shape: f32[1,1,256], index: 1, kind: output, shape index: {0}]
  %s2 = inlined_call_operand.hbm [shape: f32[1,1,256], index: 2, kind: output, shape index: {1}]
  %3 = xla_tuple %s1, %s2
  %s4 = sld [smem:[#allocation0]]
  $region30: #{tpu_custom_call.1} parent=0
    _
  %s6 = ssub.s32 1, %s4
  %s7 = scalar_select 0, %s6, %s4
  $region1: #{tpu_custom_call.1} parent=0
    #allocation2 [shape = 'u8[8192]{0}', space=vmem, size = 0x2000, scoped, tag = 'input window, operand 0, single buffered']
    #allocation3 [shape = 's32[1]{0}', space=sflag, size = 0x4, scoped, tag = 'scoped memory for tpu_custom_call.1']
    #allocation4 [shape = 's32[1]{0}', space=sflag, size = 0x4, scoped, tag = 'scoped memory for tpu_custom_call.1']
    #allocation5 [shape = 'u8[1024]{0}', space=vmem, size = 0x400, scoped, tag = 'output window, operand 0, single buffered']
    #allocation6 [shape = 'u8[1024]{0}', space=vmem, size = 0x400, scoped, tag = 'output window, operand 1, single buffered']
    #allocation7 [shape = 's32[1]{0}', space=sflag, size = 0x4, scoped, tag = 'scoped memory for tpu_custom_call.1']
    %8 = vsyncpa [#allocation3], 0
    %9 = vsyncpa [#allocation4], 0
    %10 = vsyncpa [#allocation7], 0
    // Predicated region
    $region2: #{tpu_custom_call.1} parent=1 // pred_check
      _
    $region3: #{tpu_custom_call.1} parent=1 // pred_check_branch
      %12 = sbr.rel (0) target = $region5
    $region4: #{tpu_custom_call.1} parent=1 // pred_region
      %s13 = sadd.s32 0, 0
      %15 = vsyncadd [#allocation3], 0
      %s16 = smul.addr %s13, 2
      %s17 = smul.addr %s16, 8
      %s18 = scalar_lea.hbm %s0, %s17
      %s20 = sshll.u32 %s18, 4
      %s21 = int_to_ptr.hbm [resolvable:$true] %s20
      %s22 = sshll.u32 [#allocation2], 4
      %s23 = int_to_ptr.vmem [resolvable:$true] %s22
      %25 = dma.hbm_to_vmem [thread:$0]  %s21, 256, %s23, [#allocation3]
    $region5: #{tpu_custom_call.1} parent=1 // pred_fallthru
      _
    // Predicated region
    $region6: #{tpu_custom_call.1} parent=1 // pred_check
      _
    $region7: #{tpu_custom_call.1} parent=1 // pred_check_branch
      %27 = sbr.rel (0) target = $region9
    $region8: #{tpu_custom_call.1} parent=1 // pred_region
      %29 = dma.done [#allocation3], 256
    $region9: #{tpu_custom_call.1} parent=1 // pred_fallthru
      _
    %s30 = sadd.s32 0, 0
    %p31 = scmp.eq.s32.totalorder 0, 0
    // Predicated region
    $region10: #{tpu_custom_call.1} parent=1 // pred_check
      %p32 = pneg %p31
    $region11: #{tpu_custom_call.1} parent=1 // pred_check_branch
      %34 = sbr.rel (%p32) target = $region13
    $region12: #{tpu_custom_call.1} parent=1 // pred_region
      %v35 = vlaneseq
      %vm36 = vcmp.ge.s32.totalorder %v35, 0
      %vm37 = vcmp.lt.s32.totalorder %v35, 256
      %vm38 = vmand %vm36, %vm37
      %39 = vst.msk [vmem:[#allocation5] sm:$0x3] %vm38, 0.0
      %40 = vst.msk [vmem:[#allocation6] sm:$0x3] %vm38, 0.0
    $region13: #{tpu_custom_call.1} parent=1 // pred_fallthru
      _
    %v41 = vld [vmem:[#allocation2] sm:$0xff]
    %v42 = vld [vmem:[#allocation2 + $0x8] sm:$0xff]
    %43 = vrot.lane.b32.xlu0 %v41, 112
    %v44 = vpop.permute.xlu0 %43
    %45 = vrot.lane.b32.xlu0 %v42, 112
    %v46 = vpop.permute.xlu0 %45
    %v47 = vlaneseq
    %v48 = vand.u32 %v47, 127
    %vm49 = vcmp.lt.s32.totalorder %v48, 112
    %v50 = vsel %vm49, %v44, %v46
    %v51 = vsel %vm49, %v46, %v44
    %v52 = vsub.f32 %v50, %v41
    %v53 = vsub.f32 %v51, %v42
    %54 = vrot.lane.b32.xlu0 %v41, 127
    %v55 = vpop.permute.xlu0 %54
    %56 = vrot.lane.b32.xlu0 %v42, 127
    %v57 = vpop.permute.xlu0 %56
    %vm58 = vcmp.lt.s32.totalorder %v48, 127
    %v59 = vsel %vm58, %v55, %v57
    %v60 = vsel %vm58, %v57, %v55
    %v61 = vsub.f32 %v59, %v41
    %v62 = vsub.f32 %v60, %v42
    %v63 = vld [vmem:[#allocation5] sm:$0x3]
    %v64 = vmul.f32 %v52, %v52
    %v65 = vmul.f32 %v53, %v53
    %v66 = vrot.slane %v64, 4
    %v67 = vadd.f32 %v64, %v66
    %v68 = vrot.slane %v67, 2
    %v69 = vadd.f32 %v67, %v68
    %v70 = vrot.slane %v69, 1
    %v71 = vadd.f32 %v69, %v70
    %v72 = vrot.slane %v65, 4
    %v73 = vadd.f32 %v65, %v72
    %v74 = vrot.slane %v73, 2
    %v75 = vadd.f32 %v73, %v74
    %v76 = vrot.slane %v75, 1
    %v77 = vadd.f32 %v75, %v76
    %v80 = vrot.slane %v77, 7
    %vm81 = vcmask 1040384
    %v82 = vsel %vm81, %v71, %v80
    %v84 = vadd.f32 %v63, %v82
    %v85 = vlaneseq
    %vm86 = vcmp.ge.s32.totalorder %v85, 0
    %vm87 = vcmp.lt.s32.totalorder %v85, 256
    %vm88 = vmand %vm86, %vm87
    %89 = vst.msk [vmem:[#allocation5] sm:$0x3] %vm88, %v84
    %v90 = vld [vmem:[#allocation6] sm:$0x3]
    %v91 = vmul.f32 %v61, %v61
    %v92 = vmul.f32 %v62, %v62
    %v93 = vrot.slane %v91, 4
    %v94 = vadd.f32 %v91, %v93
    %v95 = vrot.slane %v94, 2
    %v96 = vadd.f32 %v94, %v95
    %v97 = vrot.slane %v96, 1
    %v98 = vadd.f32 %v96, %v97
    %v99 = vrot.slane %v92, 4
    %v100 = vadd.f32 %v92, %v99
    %v101 = vrot.slane %v100, 2
    %v102 = vadd.f32 %v100, %v101
    %v103 = vrot.slane %v102, 1
    %v104 = vadd.f32 %v102, %v103
    %v107 = vrot.slane %v104, 7
    %v108 = vsel %vm81, %v98, %v107
    %v110 = vadd.f32 %v90, %v108
    %111 = vst.msk [vmem:[#allocation6] sm:$0x3] %vm88, %v110
    // Predicated region
    $region14: #{tpu_custom_call.1} parent=1 // pred_check
      _
    $region15: #{tpu_custom_call.1} parent=1 // pred_check_branch
      %113 = sbr.rel (0) target = $region17
    $region16: #{tpu_custom_call.1} parent=1 // pred_region
      %115 = vsyncadd [#allocation4], 0
      %s117 = sshll.u32 [#allocation5], 4
      %s118 = int_to_ptr.vmem [resolvable:$true] %s117
      %s119 = sshll.u32 %s1, 4
      %s120 = int_to_ptr.hbm [resolvable:$true] %s119
      %122 = dma.vmem_to_hbm [thread:$0]  %s118, 32, %s120, [#allocation4]
    $region17: #{tpu_custom_call.1} parent=1 // pred_fallthru
      _
    // Predicated region
    $region18: #{tpu_custom_call.1} parent=1 // pred_check
      _
    $region19: #{tpu_custom_call.1} parent=1 // pred_check_branch
      %124 = sbr.rel (0) target = $region21
    $region20: #{tpu_custom_call.1} parent=1 // pred_region
      %126 = vsyncadd [#allocation7], 0
      %s128 = sshll.u32 [#allocation6], 4
      %s129 = int_to_ptr.vmem [resolvable:$true] %s128
      %s130 = sshll.u32 %s2, 4
      %s131 = int_to_ptr.hbm [resolvable:$true] %s130
      %133 = dma.vmem_to_hbm [thread:$0]  %s129, 32, %s131, [#allocation7]
    $region21: #{tpu_custom_call.1} parent=1 // pred_fallthru
      _
    // Predicated region
    $region22: #{tpu_custom_call.1} parent=1 // pred_check
      _
    $region23: #{tpu_custom_call.1} parent=1 // pred_check_branch
      %135 = sbr.rel (0) target = $region25
    $region24: #{tpu_custom_call.1} parent=1 // pred_region
      %137 = dma.done [#allocation4], 32
    $region25: #{tpu_custom_call.1} parent=1 // pred_fallthru
      _
    // Predicated region
    $region26: #{tpu_custom_call.1} parent=1 // pred_check
      _
    $region27: #{tpu_custom_call.1} parent=1 // pred_check_branch
      %139 = sbr.rel (0) target = $region29
    $region28: #{tpu_custom_call.1} parent=1 // pred_region
      %141 = dma.done [#allocation7], 32
    $region29: #{tpu_custom_call.1} parent=1 // pred_fallthru
      _
    %142 = vsyncpa [#allocation3], 1
    %143 = vsyncpa [#allocation4], 1
    %144 = vsyncpa [#allocation7], 1

</llo_original>
